<compile_context>
chip_gen: v7x
topology: tpu7x:2x2x1
jax: 0.10.0
libtpu: 0.0.40
codegen_flags: <defaults>
</compile_context>

<pallas_src>
import numpy as np
import jax
import jax.numpy as jnp
from jax.experimental import pallas as pl
from jax.experimental.pallas import tpu as pltpu

LANE = 128     # weight/activation feature dims padded to this (lane-dense stores)
SUBLANE = 16   # batch tiles kept multiples of 16 (bf16 sublane packing)
MAX_TM = 4096  # cap on rows per grid step


def _round_up(n, m):
    return ((n + m - 1) // m) * m


def _tensorcores_per_chip():
    """Best-effort TensorCores-per-chip detection (v7x has 2; v5e/v6e have 1)."""
    try:
        dev = jax.devices()[0]
        for attr in ("num_cores", "core_count", "num_cores_per_chip"):
            n = getattr(dev, attr, None)
            if isinstance(n, int) and n > 0:
                return min(int(n), 2)
    except Exception:
        pass
    return 1


def policy_mlp_kernel(x_ref, w0_ref, b0_ref, w1_ref, b1_ref, w2_ref, b2_ref, o_ref):
    # layer 0: Linear + ReLU (bf16 MXU operands, f32 accumulate / f32 epilogue)
    h = jnp.dot(x_ref[...], w0_ref[...], preferred_element_type=jnp.float32)
    h = jnp.maximum(h + b0_ref[...], 0.0)
    # hidden layer: Linear + ReLU
    h = jnp.dot(h.astype(w1_ref.dtype), w1_ref[...],
                preferred_element_type=jnp.float32)
    h = jnp.maximum(h + b1_ref[...], 0.0)
    # output layer: Linear + sigmoid; lane-dense bf16 store
    h = jnp.dot(h.astype(w2_ref.dtype), w2_ref[...],
                preferred_element_type=jnp.float32)
    o_ref[...] = jax.nn.sigmoid(h + b2_ref[...]).astype(o_ref.dtype)


def _pad_params(params):
    """Zero-pad weight output dims (and hidden input dims) to LANE; cast W to bf16.
    Done ONCE at closure-creation time. W0's input dim is left unpadded."""
    (w0, b0), (w1, b1), (w2, b2) = params
    state_dim = w0.shape[0]
    h0p = _round_up(w0.shape[1], LANE)
    h1p = _round_up(w1.shape[1], LANE)
    outp = _round_up(w2.shape[1], LANE)

    def pad_w(w, din, dout):
        wp = jnp.zeros((din, dout), jnp.float32).at[: w.shape[0], : w.shape[1]].set(w)
        return wp.astype(jnp.bfloat16)

    def pad_b(b, dout):
        return jnp.zeros((1, dout), jnp.float32).at[:, : b.shape[1]].set(b)

    return (pad_w(w0, state_dim, h0p), pad_b(b0, h0p),
            pad_w(w1, h0p, h1p),       pad_b(b1, h1p),
            pad_w(w2, h1p, outp),      pad_b(b2, outp))


def make_policy_forward(params, num_tensorcores=None):
    """Builds a jitted forward(x: [B, state_dim] f32) -> [B, action_dim] f32.
    Weight padding / bf16 casts happen once here, not per call."""
    state_dim = params[0][0].shape[0]
    action_dim = params[-1][0].shape[1]
    w0p, b0p, w1p, b1p, w2p, b2p = _pad_params(params)
    d_h0, d_h1, d_out = w0p.shape[1], w1p.shape[1], w2p.shape[1]
    ntc = num_tensorcores if num_tensorcores is not None else _tensorcores_per_chip()

    @jax.jit
    def forward(x):
        B = x.shape[0]
        # Batch tiling: single grid step on single-TC chips; 2 parallel steps on
        # dual-TC chips (each >= one sublane tile); tm capped to keep tiles modest.
        B16 = _round_up(max(B, 1), SUBLANE)
        steps = ntc if (ntc > 1 and B16 >= 2 * SUBLANE) else 1
        tm = min(_round_up(pl.cdiv(B16, steps), SUBLANE), MAX_TM)
        B_pad = _round_up(B16, tm)
        grid = (B_pad // tm,)

        # Pad batch rows only (feature dim stays state_dim); fused under jit.
        xp = jnp.zeros((B_pad, state_dim), jnp.bfloat16).at[:B].set(
            x.astype(jnp.bfloat16))

        rep = lambda shape: pl.BlockSpec(shape, lambda i: (0, 0))  # grid-invariant

        cost = pl.CostEstimate(
            flops=int(2 * B_pad * (state_dim * d_h0 + d_h0 * d_h1 + d_h1 * d_out)),
            transcendentals=int(B_pad * d_out),
            bytes_accessed=int(
                B_pad * state_dim * 2                        # bf16 x stream
                + (w0p.size + w1p.size + w2p.size) * 2       # bf16 weights
                + (b0p.size + b1p.size + b2p.size) * 4       # f32 biases
                + B_pad * d_out * 2),                        # bf16 output stream
        )

        out = pl.pallas_call(
            policy_mlp_kernel,
            out_shape=jax.ShapeDtypeStruct((B_pad, d_out), jnp.bfloat16),
            grid=grid,
            in_specs=[
                pl.BlockSpec((tm, state_dim), lambda i: (i, 0)),  # x batch tile
                rep(w0p.shape), rep(b0p.shape),
                rep(w1p.shape), rep(b1p.shape),
                rep(w2p.shape), rep(b2p.shape),
            ],
            out_specs=pl.BlockSpec((tm, d_out), lambda i: (i, 0)),  # lane-dense store
            compiler_params=pltpu.CompilerParams(
                dimension_semantics=("parallel",)),
            cost_estimate=cost,
        )(xp, w0p, b0p, w1p, b1p, w2p, b2p)

        return out[:B, :action_dim].astype(jnp.float32)

    return forward


def init_policy_params(key, state_dim, nneurons, action_dim):
    """Deterministic init matching the PyTorch module's layer shapes.
    Returns list of (W[in,out], b[1,out]) in f32 (padding/casting handled once
    by make_policy_forward)."""
    dims = [state_dim] + list(nneurons) + [action_dim]
    params = []
    for i in range(len(dims) - 1):
        key, kw, kb = jax.random.split(key, 3)
        bound = 1.0 / np.sqrt(dims[i])  # PyTorch nn.Linear default uniform bound
        w = jax.random.uniform(kw, (dims[i], dims[i + 1]), jnp.float32, -bound, bound)
        b = jax.random.uniform(kb, (1, dims[i + 1]), jnp.float32, -bound, bound)
        params.append((w, b))
    return params


def policy_forward_ref(x, params):
    h = x
    for (w, b) in params[:-1]:
        h = jnp.maximum(h @ w + b, 0.0)
    w, b = params[-1]
    return jax.nn.sigmoid(h @ w + b)


if __name__ == "__main__":
    # Small shapes consistent with the module (Nneurons has 2 hidden layers).
    state_dim = 32
    nneurons = np.array([64, 48])
    action_dim = 16
    batch = 16

    key = jax.random.PRNGKey(0)
    key, kx = jax.random.split(key)
    x = jax.random.normal(kx, (batch, state_dim), jnp.float32)

    params = init_policy_params(key, state_dim, nneurons, action_dim)

    forward = make_policy_forward(params)
    out = forward(x)
    out = jax.block_until_ready(out)
    assert out.shape == (batch, action_dim)

    ref = policy_forward_ref(x, params)
    # bf16 matmul operands + bf16 output store (f32 accumulation/epilogue):
    # loosened tolerance vs the pure-f32 reference.
    np.testing.assert_allclose(np.asarray(out), np.asarray(ref), rtol=2e-2, atol=2e-2)

    print("KERNEL_OK")
</pallas_src>

<mosaic_0001>
module attributes {stable_mosaic.version = 11 : i64} {
  func.func @policy_mlp_kernel(%arg0: i32, %arg1: memref<16x32xbf16, #tpu.memory_space<vmem>>, %arg2: memref<32x128xbf16, #tpu.memory_space<vmem>>, %arg3: memref<1x128xf32, #tpu.memory_space<vmem>>, %arg4: memref<128x128xbf16, #tpu.memory_space<vmem>>, %arg5: memref<1x128xf32, #tpu.memory_space<vmem>>, %arg6: memref<128x128xbf16, #tpu.memory_space<vmem>>, %arg7: memref<1x128xf32, #tpu.memory_space<vmem>>, %arg8: memref<16x128xbf16, #tpu.memory_space<vmem>>) attributes {dimension_semantics = [#tpu.dimension_semantics<parallel>], iteration_bounds = array<i64: 1>, scalar_prefetch = 0 : i64, scratch_operands = 0 : i64, tpu.core_type = #tpu.core_type<tc>, window_params = [{transform_indices = @transform_0, window_bounds = array<i64: 16, 32>}, {pipeline_mode = #tpu.pipeline_mode<synchronous>, transform_indices = @transform_1, window_bounds = array<i64: 32, 128>}, {pipeline_mode = #tpu.pipeline_mode<synchronous>, transform_indices = @transform_2, window_bounds = array<i64: 1, 128>}, {pipeline_mode = #tpu.pipeline_mode<synchronous>, transform_indices = @transform_3, window_bounds = array<i64: 128, 128>}, {pipeline_mode = #tpu.pipeline_mode<synchronous>, transform_indices = @transform_4, window_bounds = array<i64: 1, 128>}, {pipeline_mode = #tpu.pipeline_mode<synchronous>, transform_indices = @transform_5, window_bounds = array<i64: 128, 128>}, {pipeline_mode = #tpu.pipeline_mode<synchronous>, transform_indices = @transform_6, window_bounds = array<i64: 1, 128>}, {transform_indices = @transform_7, window_bounds = array<i64: 16, 128>}]} {
    %c0 = arith.constant 0 : index
    %c0_0 = arith.constant 0 : index
    %0 = vector.load %arg1[%c0, %c0_0] : memref<16x32xbf16, #tpu.memory_space<vmem>>, vector<16x32xbf16>
    %c0_1 = arith.constant 0 : index
    %c0_2 = arith.constant 0 : index
    %1 = vector.load %arg2[%c0_1, %c0_2] : memref<32x128xbf16, #tpu.memory_space<vmem>>, vector<32x128xbf16>
    %cst = arith.constant dense<0.000000e+00> : vector<16x128xf32>
    %2 = tpu.matmul %0, %1, %cst {dimension_numbers = #tpu.dot_dimension_numbers<[1], [0], [0], [1], [0, 0, 1, 1], [], []>} : vector<16x32xbf16>, vector<32x128xbf16>, vector<16x128xf32> -> vector<16x128xf32>
    %c0_3 = arith.constant 0 : index
    %c0_4 = arith.constant 0 : index
    %3 = vector.load %arg3[%c0_3, %c0_4] : memref<1x128xf32, #tpu.memory_space<vmem>>, vector<1x128xf32>
    %4 = vector.broadcast %3 : vector<1x128xf32> to vector<16x128xf32>
    %5 = arith.addf %2, %4 : vector<16x128xf32>
    %cst_5 = arith.constant 0.000000e+00 : f32
    %6 = vector.broadcast %cst_5 : f32 to vector<16x128xf32>
    %7 = arith.maximumf %5, %6 : vector<16x128xf32>
    %8 = arith.truncf %7 : vector<16x128xf32> to vector<16x128xbf16>
    %c0_6 = arith.constant 0 : index
    %c0_7 = arith.constant 0 : index
    %9 = vector.load %arg4[%c0_6, %c0_7] : memref<128x128xbf16, #tpu.memory_space<vmem>>, vector<128x128xbf16>
    %cst_8 = arith.constant dense<0.000000e+00> : vector<16x128xf32>
    %10 = tpu.matmul %8, %9, %cst_8 {dimension_numbers = #tpu.dot_dimension_numbers<[1], [0], [0], [1], [0, 0, 1, 1], [], []>} : vector<16x128xbf16>, vector<128x128xbf16>, vector<16x128xf32> -> vector<16x128xf32>
    %c0_9 = arith.constant 0 : index
    %c0_10 = arith.constant 0 : index
    %11 = vector.load %arg5[%c0_9, %c0_10] : memref<1x128xf32, #tpu.memory_space<vmem>>, vector<1x128xf32>
    %12 = vector.broadcast %11 : vector<1x128xf32> to vector<16x128xf32>
    %13 = arith.addf %10, %12 : vector<16x128xf32>
    %cst_11 = arith.constant 0.000000e+00 : f32
    %14 = vector.broadcast %cst_11 : f32 to vector<16x128xf32>
    %15 = arith.maximumf %13, %14 : vector<16x128xf32>
    %16 = arith.truncf %15 : vector<16x128xf32> to vector<16x128xbf16>
    %c0_12 = arith.constant 0 : index
    %c0_13 = arith.constant 0 : index
    %17 = vector.load %arg6[%c0_12, %c0_13] : memref<128x128xbf16, #tpu.memory_space<vmem>>, vector<128x128xbf16>
    %cst_14 = arith.constant dense<0.000000e+00> : vector<16x128xf32>
    %18 = tpu.matmul %16, %17, %cst_14 {dimension_numbers = #tpu.dot_dimension_numbers<[1], [0], [0], [1], [0, 0, 1, 1], [], []>} : vector<16x128xbf16>, vector<128x128xbf16>, vector<16x128xf32> -> vector<16x128xf32>
    %c0_15 = arith.constant 0 : index
    %c0_16 = arith.constant 0 : index
    %19 = vector.load %arg7[%c0_15, %c0_16] : memref<1x128xf32, #tpu.memory_space<vmem>>, vector<1x128xf32>
    %20 = vector.broadcast %19 : vector<1x128xf32> to vector<16x128xf32>
    %21 = arith.addf %18, %20 : vector<16x128xf32>
    %22 = arith.negf %21 : vector<16x128xf32>
    %23 = math.exp %22 : vector<16x128xf32>
    %cst_17 = arith.constant 1.000000e+00 : f32
    %24 = vector.broadcast %cst_17 : f32 to vector<16x128xf32>
    %25 = arith.addf %24, %23 : vector<16x128xf32>
    %26 = arith.divf %24, %25 : vector<16x128xf32>
    %27 = arith.truncf %26 : vector<16x128xf32> to vector<16x128xbf16>
    %c0_18 = arith.constant 0 : index
    %c0_19 = arith.constant 0 : index
    %28 = vector.load %arg8[%c0_18, %c0_19] : memref<16x128xbf16, #tpu.memory_space<vmem>>, vector<16x128xbf16>
    tpu.vector_store %arg8[%c0_18, %c0_19], %27 {strides = array<i32>} : memref<16x128xbf16, #tpu.memory_space<vmem>>, vector<16x128xbf16>,
    return
  }
  func.func @transform_0(%arg0: i32) -> (i32, i32) {
    %c0_i32 = arith.constant 0 : i32
    %c0_i32_0 = arith.constant 0 : i32
    return %arg0, %c0_i32 : i32, i32
  }
  func.func @transform_1(%arg0: i32) -> (i32, i32) {
    %c0_i32 = arith.constant 0 : i32
    %c0_i32_0 = arith.constant 0 : i32
    %c0_i32_1 = arith.constant 0 : i32
    return %c0_i32, %c0_i32_0 : i32, i32
  }
  func.func @transform_2(%arg0: i32) -> (i32, i32) {
    %c0_i32 = arith.constant 0 : i32
    %c0_i32_0 = arith.constant 0 : i32
    %c0_i32_1 = arith.constant 0 : i32
    return %c0_i32, %c0_i32_0 : i32, i32
  }
  func.func @transform_3(%arg0: i32) -> (i32, i32) {
    %c0_i32 = arith.constant 0 : i32
    %c0_i32_0 = arith.constant 0 : i32
    %c0_i32_1 = arith.constant 0 : i32
    return %c0_i32, %c0_i32_0 : i32, i32
  }
  func.func @transform_4(%arg0: i32) -> (i32, i32) {
    %c0_i32 = arith.constant 0 : i32
    %c0_i32_0 = arith.constant 0 : i32
    %c0_i32_1 = arith.constant 0 : i32
    return %c0_i32, %c0_i32_0 : i32, i32
  }
  func.func @transform_5(%arg0: i32) -> (i32, i32) {
    %c0_i32 = arith.constant 0 : i32
    %c0_i32_0 = arith.constant 0 : i32
    %c0_i32_1 = arith.constant 0 : i32
    return %c0_i32, %c0_i32_0 : i32, i32
  }
  func.func @transform_6(%arg0: i32) -> (i32, i32) {
    %c0_i32 = arith.constant 0 : i32
    %c0_i32_0 = arith.constant 0 : i32
    %c0_i32_1 = arith.constant 0 : i32
    return %c0_i32, %c0_i32_0 : i32, i32
  }
  func.func @transform_7(%arg0: i32) -> (i32, i32) {
    %c0_i32 = arith.constant 0 : i32
    %c0_i32_0 = arith.constant 0 : i32
    return %arg0, %c0_i32 : i32, i32
  }
}

</mosaic_0001>

<llo_original>
// kernel: forward.1
$region0: #{forward.1}
  #allocation0 [shape = 'u32[]', space=smem, size = 0x4, offset = 0x4, fixed_abs, tag = 'smem constant byte address 0x4 - core index']
  #allocation1 [shape = 'u32[144,128]{1,0:T(1,128)}', space=vmem, size = 0x12000, scoped, tag = 'internal scratch']
  %s0 = inlined_call_operand.vmem [shape: bf16[16,32], index: 0, kind: input, shape index: {}]
  %s1 = inlined_call_operand.vmem [shape: bf16[32,128], index: 1, kind: input, shape index: {}]
  %s2 = inlined_call_operand.vmem [shape: f32[1,128], index: 2, kind: input, shape index: {}]
  %s3 = inlined_call_operand.hbm [shape: bf16[128,128], index: 3, kind: input, shape index: {}]
  %s4 = inlined_call_operand.vmem [shape: f32[1,128], index: 4, kind: input, shape index: {}]
  %s5 = inlined_call_operand.hbm [shape: bf16[128,128], index: 5, kind: input, shape index: {}]
  %s6 = inlined_call_operand.vmem [shape: f32[1,128], index: 6, kind: input, shape index: {}]
  %s7 = inlined_call_operand.vmem [shape: bf16[16,128], index: 7, kind: output, shape index: {}]
  %s8 = sld [smem:[#allocation0]]
  $region46: #{forward.1} parent=0
    _
  %s10 = ssub.s32 1, %s8
  %s11 = scalar_select 0, %s10, %s8
  $region1: #{forward.1} parent=0
    #allocation2 [shape = 'u8[32768]{0}', space=vmem, size = 0x8000, scoped, tag = 'input window, operand 3, single buffered']
    #allocation3 [shape = 's32[1]{0}', space=sflag, size = 0x4, scoped, tag = 'scoped memory for forward.1']
    #allocation4 [shape = 'u8[32768]{0}', space=vmem, size = 0x8000, scoped, tag = 'input window, operand 5, single buffered']
    #allocation5 [shape = 's32[1]{0}', space=sflag, size = 0x4, scoped, tag = 'scoped memory for forward.1']
    %12 = vsyncpa [#allocation3], 0
    %13 = vsyncpa [#allocation5], 0
    // Predicated region
    $region2: #{forward.1} parent=1 // pred_check
      _
    $region3: #{forward.1} parent=1 // pred_check_branch
      %15 = sbr.rel (0) target = $region5
    $region4: #{forward.1} parent=1 // pred_region
      _
    $region5: #{forward.1} parent=1 // pred_fallthru
      _
    // Predicated region
    $region6: #{forward.1} parent=1 // pred_check
      _
    $region7: #{forward.1} parent=1 // pred_check_branch
      %17 = sbr.rel (0) target = $region9
    $region8: #{forward.1} parent=1 // pred_region
      _
    $region9: #{forward.1} parent=1 // pred_fallthru
      _
    // Predicated region
    $region10: #{forward.1} parent=1 // pred_check
      _
    $region11: #{forward.1} parent=1 // pred_check_branch
      %19 = sbr.rel (0) target = $region13
    $region12: #{forward.1} parent=1 // pred_region
      _
    $region13: #{forward.1} parent=1 // pred_fallthru
      _
    // Predicated region
    $region14: #{forward.1} parent=1 // pred_check
      _
    $region15: #{forward.1} parent=1 // pred_check_branch
      %21 = sbr.rel (0) target = $region17
    $region16: #{forward.1} parent=1 // pred_region
      %s23 = ssub.s32 1024, 1024
      %24 = vsyncadd [#allocation3], %s23
      %s25 = sshll.u32 [#allocation2], 4
      %s26 = int_to_ptr.vmem [resolvable:$true] %s25
      %31 = dma.hbm_to_vmem [thread:$0]  %s3, 1024, %s26, [#allocation3], 64, 64, 4
    $region17: #{forward.1} parent=1 // pred_fallthru
      _
    // Predicated region
    $region18: #{forward.1} parent=1 // pred_check
      _
    $region19: #{forward.1} parent=1 // pred_check_branch
      %33 = sbr.rel (0) target = $region21
    $region20: #{forward.1} parent=1 // pred_region
      _
    $region21: #{forward.1} parent=1 // pred_fallthru
      _
    // Predicated region
    $region22: #{forward.1} parent=1 // pred_check
      _
    $region23: #{forward.1} parent=1 // pred_check_branch
      %35 = sbr.rel (0) target = $region25
    $region24: #{forward.1} parent=1 // pred_region
      %s37 = ssub.s32 1024, 1024
      %38 = vsyncadd [#allocation5], %s37
      %s39 = sshll.u32 [#allocation4], 4
      %s40 = int_to_ptr.vmem [resolvable:$true] %s39
      %45 = dma.hbm_to_vmem [thread:$0]  %s5, 1024, %s40, [#allocation5], 64, 64, 4
    $region25: #{forward.1} parent=1 // pred_fallthru
      _
    // Predicated region
    $region26: #{forward.1} parent=1 // pred_check
      _
    $region27: #{forward.1} parent=1 // pred_check_branch
      %47 = sbr.rel (0) target = $region29
    $region28: #{forward.1} parent=1 // pred_region
      _
    $region29: #{forward.1} parent=1 // pred_fallthru
      _
    // Predicated region
    $region30: #{forward.1} parent=1 // pred_check
      _
    $region31: #{forward.1} parent=1 // pred_check_branch
      %49 = sbr.rel (0) target = $region33
    $region32: #{forward.1} parent=1 // pred_region
      %50 = dma.done [#allocation3], 1024
    $region33: #{forward.1} parent=1 // pred_fallthru
      _
    // Predicated region
    $region34: #{forward.1} parent=1 // pred_check
      _
    $region35: #{forward.1} parent=1 // pred_check_branch
      %52 = sbr.rel (0) target = $region37
    $region36: #{forward.1} parent=1 // pred_region
      %53 = dma.done [#allocation5], 1024
    $region37: #{forward.1} parent=1 // pred_fallthru
      _
    %v55 = vld [vmem:[%s0] sm:$0xf]
    %v56 = vld [vmem:[%s0 + $0x4] sm:$0xf]
    %v57 = vld [vmem:[%s1] sm:$0xf]
    %v58 = vld [vmem:[%s1 + $0x4] sm:$0xf]
    %v59 = vld [vmem:[%s1 + $0x8] sm:$0xf]
    %v60 = vld [vmem:[%s1 + $0xc] sm:$0xf]
    %v61 = vld [vmem:[%s2] sm:$0x1]
    %v63 = vlaneseq
    %v64 = vshrl.u32 %v63, 7
    %v65 = vsub.s32 0, %v64
    %v66 = vrot.slane %v61, %v65
    %v70 = vunpack.c.l.b16 %v55
    %v71 = vunpack.c.l.b16 %v56
    %v72 = vpack.c.b16 %v71, %v70
    %v77 = vunpack.c.l.b16 %v57
    %v78 = vunpack.c.l.b16 %v58
    %v79 = vunpack.c.l.b16 %v59
    %v80 = vunpack.c.l.b16 %v60
    %v81 = vpack.c.b16 %v78, %v77
    %v82 = vpack.c.b16 %v80, %v79
    %vm85 = vcmask 261120
    %v87 = vsel %vm85, %v72, 0
    %89 = vmatprep.subr.bf16.mxu0 0
    %90 = vmatpush1.bf16.msra.mxu0 %v81
    %91 = vmatprep.subr.bf16.mxu0 0
    %92 = vmatpush1.bf16.msra.mxu0 %v82
    %93 = vmatprep.subr.bf16.mxu0 0
    %94 = vmatpush1.bf16.msra.mxu0 0
    %95 = vmatprep.subr.bf16.mxu0 0
    %96 = vmatpush1.bf16.msra.mxu0 0
    %97 = vmatprep.subr.bf16.mxu0 0
    %98 = vmatpush1.bf16.msra.mxu0 0
    %99 = vmatprep.subr.bf16.mxu0 0
    %100 = vmatpush1.bf16.msra.mxu0 0
    %101 = vmatprep.subr.bf16.mxu0 0
    %102 = vmatpush1.bf16.msra.mxu0 0
    %103 = vmatprep.subr.bf16.mxu0 0
    %104 = vmatpush1.bf16.msra.mxu0 0
    %105 = vmatprep.subr.bf16.mxu0 0
    %106 = vmatpush1.bf16.msra.mxu0 0
    %107 = vmatprep.subr.bf16.mxu0 0
    %108 = vmatpush1.bf16.msra.mxu0 0
    %109 = vmatprep.subr.bf16.mxu0 0
    %110 = vmatpush1.bf16.msra.mxu0 0
    %111 = vmatprep.subr.bf16.mxu0 0
    %112 = vmatpush1.bf16.msra.mxu0 0
    %113 = vmatprep.subr.bf16.mxu0 0
    %114 = vmatpush1.bf16.msra.mxu0 0
    %115 = vmatprep.subr.bf16.mxu0 0
    %116 = vmatpush1.bf16.msra.mxu0 0
    %117 = vmatprep.subr.bf16.mxu0 0
    %118 = vmatpush1.bf16.msra.mxu0 0
    %119 = vmatprep.subr.bf16.mxu0 0
    %120 = vmatpush1.bf16.msra.mxu0 0
    %121 = vmatprep.mubr.bf16.mxu0 0
    %122 = vmatmul.mubr.bf16.gmra.mrb[0].mxu0 %v87
    %v123 = vpop.f32.mrb[0].mxu0
    %v124 = vadd.f32 %v66, %v123
    %v125 = vpop.f32.mrb[0].mxu0
    %v126 = vpop.f32.mrb[0].mxu0
    %v127 = vadd.f32 %v66, %v126
    %v128 = vpop.f32.mrb[0].mxu0
    %129 = vdwg.mxu0
    %v130 = vmax.f32 %v124, 0.0
    %v131 = vmax.f32 %v127, 0.0
    %v132 = vpack.c.bf16 %v131, %v130
    %v133 = vld [vmem:[#allocation2] sm:$0xf]
    %v134 = vld [vmem:[#allocation2 + $0x4] sm:$0xf]
    %v135 = vld [vmem:[#allocation2 + $0x8] sm:$0xf]
    %v136 = vld [vmem:[#allocation2 + $0xc] sm:$0xf]
    %v137 = vld [vmem:[#allocation2 + $0x10] sm:$0xf]
    %v138 = vld [vmem:[#allocation2 + $0x14] sm:$0xf]
    %v139 = vld [vmem:[#allocation2 + $0x18] sm:$0xf]
    %v140 = vld [vmem:[#allocation2 + $0x1c] sm:$0xf]
    %v141 = vld [vmem:[#allocation2 + $0x20] sm:$0xf]
    %v142 = vld [vmem:[#allocation2 + $0x24] sm:$0xf]
    %v143 = vld [vmem:[#allocation2 + $0x28] sm:$0xf]
    %v144 = vld [vmem:[#allocation2 + $0x2c] sm:$0xf]
    %v145 = vld [vmem:[#allocation2 + $0x30] sm:$0xf]
    %v146 = vld [vmem:[#allocation2 + $0x34] sm:$0xf]
    %v147 = vld [vmem:[#allocation2 + $0x38] sm:$0xf]
    %v148 = vld [vmem:[#allocation2 + $0x3c] sm:$0xf]
    %v149 = vld [vmem:[%s4] sm:$0x1]
    %v151 = vlaneseq
    %v152 = vshrl.u32 %v151, 7
    %v153 = vsub.s32 0, %v152
    %v154 = vrot.slane %v149, %v153
    %v172 = vunpack.c.l.b16 %v133
    %v173 = vunpack.c.l.b16 %v134
    %v174 = vunpack.c.l.b16 %v135
    %v175 = vunpack.c.l.b16 %v136
    %v176 = vunpack.c.l.b16 %v137
    %v177 = vunpack.c.l.b16 %v138
    %v178 = vunpack.c.l.b16 %v139
    %v179 = vunpack.c.l.b16 %v140
    %v180 = vunpack.c.l.b16 %v141
    %v181 = vunpack.c.l.b16 %v142
    %v182 = vunpack.c.l.b16 %v143
    %v183 = vunpack.c.l.b16 %v144
    %v184 = vunpack.c.l.b16 %v145
    %v185 = vunpack.c.l.b16 %v146
    %v186 = vunpack.c.l.b16 %v147
    %v187 = vunpack.c.l.b16 %v148
    %v188 = vpack.c.b16 %v173, %v172
    %v189 = vpack.c.b16 %v175, %v174
    %v190 = vpack.c.b16 %v177, %v176
    %v191 = vpack.c.b16 %v179, %v178
    %v192 = vpack.c.b16 %v181, %v180
    %v193 = vpack.c.b16 %v183, %v182
    %v194 = vpack.c.b16 %v185, %v184
    %v195 = vpack.c.b16 %v187, %v186
    %204 = vmatprep.subr.bf16.mxu0 0
    %205 = vmatpush1.bf16.msra.mxu0 %v188
    %206 = vmatprep.subr.bf16.mxu0 0
    %207 = vmatpush1.bf16.msra.mxu0 %v189
    %208 = vmatprep.subr.bf16.mxu0 0
    %209 = vmatpush1.bf16.msra.mxu0 %v190
    %210 = vmatprep.subr.bf16.mxu0 0
    %211 = vmatpush1.bf16.msra.mxu0 %v191
    %212 = vmatprep.subr.bf16.mxu0 0
    %213 = vmatpush1.bf16.msra.mxu0 %v192
    %214 = vmatprep.subr.bf16.mxu0 0
    %215 = vmatpush1.bf16.msra.mxu0 %v193
    %216 = vmatprep.subr.bf16.mxu0 0
    %217 = vmatpush1.bf16.msra.mxu0 %v194
    %218 = vmatprep.subr.bf16.mxu0 0
    %219 = vmatpush1.bf16.msra.mxu0 %v195
    %220 = vmatprep.subr.bf16.mxu0 0
    %221 = vmatpush1.bf16.msra.mxu0 0
    %222 = vmatprep.subr.bf16.mxu0 0
    %223 = vmatpush1.bf16.msra.mxu0 0
    %224 = vmatprep.subr.bf16.mxu0 0
    %225 = vmatpush1.bf16.msra.mxu0 0
    %226 = vmatprep.subr.bf16.mxu0 0
    %227 = vmatpush1.bf16.msra.mxu0 0
    %228 = vmatprep.subr.bf16.mxu0 0
    %229 = vmatpush1.bf16.msra.mxu0 0
    %230 = vmatprep.subr.bf16.mxu0 0
    %231 = vmatpush1.bf16.msra.mxu0 0
    %232 = vmatprep.subr.bf16.mxu0 0
    %233 = vmatpush1.bf16.msra.mxu0 0
    %234 = vmatprep.subr.bf16.mxu0 0
    %235 = vmatpush1.bf16.msra.mxu0 0
    %236 = vmatprep.mubr.bf16.mxu0 0
    %237 = vmatmul.mubr.bf16.gmra.mrb[0].mxu0 %v132
    %v238 = vpop.f32.mrb[0].mxu0
    %v239 = vadd.f32 %v154, %v238
    %v240 = vpop.f32.mrb[0].mxu0
    %v241 = vpop.f32.mrb[0].mxu0
    %v242 = vadd.f32 %v154, %v241
    %v243 = vpop.f32.mrb[0].mxu0
    %244 = vdwg.mxu0
    %v245 = vmax.f32 %v239, 0.0
    %v246 = vmax.f32 %v242, 0.0
    %v247 = vpack.c.bf16 %v246, %v245
    %v248 = vld [vmem:[#allocation4] sm:$0xf]
    %v249 = vld [vmem:[#allocation4 + $0x4] sm:$0xf]
    %v250 = vld [vmem:[#allocation4 + $0x8] sm:$0xf]
    %v251 = vld [vmem:[#allocation4 + $0xc] sm:$0xf]
    %v252 = vld [vmem:[#allocation4 + $0x10] sm:$0xf]
    %v253 = vld [vmem:[#allocation4 + $0x14] sm:$0xf]
    %v254 = vld [vmem:[#allocation4 + $0x18] sm:$0xf]
    %v255 = vld [vmem:[#allocation4 + $0x1c] sm:$0xf]
    %v256 = vld [vmem:[#allocation4 + $0x20] sm:$0xf]
    %v257 = vld [vmem:[#allocation4 + $0x24] sm:$0xf]
    %v258 = vld [vmem:[#allocation4 + $0x28] sm:$0xf]
    %v259 = vld [vmem:[#allocation4 + $0x2c] sm:$0xf]
    %v260 = vld [vmem:[#allocation4 + $0x30] sm:$0xf]
    %v261 = vld [vmem:[#allocation4 + $0x34] sm:$0xf]
    %v262 = vld [vmem:[#allocation4 + $0x38] sm:$0xf]
    %v263 = vld [vmem:[#allocation4 + $0x3c] sm:$0xf]
    %v264 = vld [vmem:[%s6] sm:$0x1]
    %v266 = vlaneseq
    %v267 = vshrl.u32 %v266, 7
    %v268 = vsub.s32 0, %v267
    %v269 = vrot.slane %v264, %v268
    %v287 = vunpack.c.l.b16 %v248
    %v288 = vunpack.c.l.b16 %v249
    %v289 = vunpack.c.l.b16 %v250
    %v290 = vunpack.c.l.b16 %v251
    %v291 = vunpack.c.l.b16 %v252
    %v292 = vunpack.c.l.b16 %v253
    %v293 = vunpack.c.l.b16 %v254
    %v294 = vunpack.c.l.b16 %v255
    %v295 = vunpack.c.l.b16 %v256
    %v296 = vunpack.c.l.b16 %v257
    %v297 = vunpack.c.l.b16 %v258
    %v298 = vunpack.c.l.b16 %v259
    %v299 = vunpack.c.l.b16 %v260
    %v300 = vunpack.c.l.b16 %v261
    %v301 = vunpack.c.l.b16 %v262
    %v302 = vunpack.c.l.b16 %v263
    %v303 = vpack.c.b16 %v288, %v287
    %v304 = vpack.c.b16 %v290, %v289
    %v305 = vpack.c.b16 %v292, %v291
    %v306 = vpack.c.b16 %v294, %v293
    %v307 = vpack.c.b16 %v296, %v295
    %v308 = vpack.c.b16 %v298, %v297
    %v309 = vpack.c.b16 %v300, %v299
    %v310 = vpack.c.b16 %v302, %v301
    %319 = vmatprep.subr.bf16.mxu0 0
    %320 = vmatpush1.bf16.msra.mxu0 %v303
    %321 = vmatprep.subr.bf16.mxu0 0
    %322 = vmatpush1.bf16.msra.mxu0 %v304
    %323 = vmatprep.subr.bf16.mxu0 0
    %324 = vmatpush1.bf16.msra.mxu0 %v305
    %325 = vmatprep.subr.bf16.mxu0 0
    %326 = vmatpush1.bf16.msra.mxu0 %v306
    %327 = vmatprep.subr.bf16.mxu0 0
    %328 = vmatpush1.bf16.msra.mxu0 %v307
    %329 = vmatprep.subr.bf16.mxu0 0
    %330 = vmatpush1.bf16.msra.mxu0 %v308
    %331 = vmatprep.subr.bf16.mxu0 0
    %332 = vmatpush1.bf16.msra.mxu0 %v309
    %333 = vmatprep.subr.bf16.mxu0 0
    %334 = vmatpush1.bf16.msra.mxu0 %v310
    %335 = vmatprep.subr.bf16.mxu0 0
    %336 = vmatpush1.bf16.msra.mxu0 0
    %337 = vmatprep.subr.bf16.mxu0 0
    %338 = vmatpush1.bf16.msra.mxu0 0
    %339 = vmatprep.subr.bf16.mxu0 0
    %340 = vmatpush1.bf16.msra.mxu0 0
    %341 = vmatprep.subr.bf16.mxu0 0
    %342 = vmatpush1.bf16.msra.mxu0 0
    %343 = vmatprep.subr.bf16.mxu0 0
    %344 = vmatpush1.bf16.msra.mxu0 0
    %345 = vmatprep.subr.bf16.mxu0 0
    %346 = vmatpush1.bf16.msra.mxu0 0
    %347 = vmatprep.subr.bf16.mxu0 0
    %348 = vmatpush1.bf16.msra.mxu0 0
    %349 = vmatprep.subr.bf16.mxu0 0
    %350 = vmatpush1.bf16.msra.mxu0 0
    %351 = vmatprep.mubr.bf16.mxu0 0
    %352 = vmatmul.mubr.bf16.gmra.mrb[0].mxu0 %v247
    %v353 = vpop.f32.mrb[0].mxu0
    %v354 = vadd.f32 %v269, %v353
    %v355 = vpop.f32.mrb[0].mxu0
    %v356 = vpop.f32.mrb[0].mxu0
    %v357 = vadd.f32 %v269, %v356
    %v358 = vpop.f32.mrb[0].mxu0
    %359 = vdwg.mxu0
    %v360 = vxor.u32 %v354, 2147483648
    %v361 = vxor.u32 %v357, 2147483648
    %v362 = vmul.f32 %v360, 1.442695
    %v363 = vpow.pop %v362
    %v364 = vmul.f32 %v361, 1.442695
    %v365 = vpow.pop %v364
    %v366 = vadd.f32 %v363, 1.0
    %v367 = vadd.f32 %v365, 1.0
    %v368 = vrcp.pop %v366
    %v369 = vmul.f32 1.0, %v368
    %v370 = vrcp.pop %v367
    %v371 = vmul.f32 1.0, %v370
    %v372 = vpack.c.bf16 %v371, %v369
    %v374 = vunpack.c.l.b16 %v372
    %v375 = vunpack.c.h.b16 %v372
    %v376 = vpack.c.b16 %v374, %v374
    %v377 = vpack.c.b16 %v375, %v375
    %380 = vst [vmem:[%s7] sm:$0xf] %v376
    %381 = vst [vmem:[%s7 + $0x4] sm:$0xf] %v377
    // Predicated region
    $region38: #{forward.1} parent=1 // pred_check
      _
    $region39: #{forward.1} parent=1 // pred_check_branch
      %383 = sbr.rel (0) target = $region41
    $region40: #{forward.1} parent=1 // pred_region
      _
    $region41: #{forward.1} parent=1 // pred_fallthru
      _
    // Predicated region
    $region42: #{forward.1} parent=1 // pred_check
      _
    $region43: #{forward.1} parent=1 // pred_check_branch
      %385 = sbr.rel (0) target = $region45
    $region44: #{forward.1} parent=1 // pred_region
      _
    $region45: #{forward.1} parent=1 // pred_fallthru
      _
    %386 = vsyncpa [#allocation3], 1
    %387 = vsyncpa [#allocation5], 1

</llo_original>
